<compile_context>
chip_gen: v7x
topology: tpu7x:2x2x1
jax: 0.10.0
libtpu: 0.0.40
codegen_flags: <defaults>
</compile_context>

<pallas_src>
import functools
import math

import jax
import jax.numpy as jnp
from jax.experimental import pallas as pl
from jax.experimental.pallas import tpu as pltpu

_LANE = 128


def _round_up(a, m):
    return ((a + m - 1) // m) * m


def _mgh_kernel(x_ref, w_ref, b_ref, out_ref, *, Kp, min_var, approx_recip):
    # Single fused GEMM: [TB, D] @ [D, 3*Kp] -> f32 [TB, 3*Kp].
    z = jnp.dot(x_ref[...], w_ref[...],
                preferred_element_type=jnp.float32) + b_ref[...]

    # Head 0: mus (identity).  Static lane-aligned slice -> unmasked store.
    out_ref[:, :Kp] = z[:, :Kp].astype(out_ref.dtype)

    # Head 1: sigs = sqrt(softplus(z2) + min_var) on its own Kp lanes only.
    # Numerically stable softplus matching F.softplus (beta=1, threshold=20).
    z2 = z[:, Kp:2 * Kp]
    sp = jnp.where(z2 > 20.0, z2, jnp.log1p(jnp.exp(jnp.minimum(z2, 20.0))))
    out_ref[:, Kp:2 * Kp] = jnp.sqrt(sp + min_var).astype(out_ref.dtype)

    # Head 2: ws = softmax over this head's lanes only.  The Kp-K padded
    # lanes carry a -1e30 bias, so exp(.) == 0 there and the result equals
    # softmax over the real K lanes.
    z3 = z[:, 2 * Kp:3 * Kp]
    m = jnp.max(z3, axis=-1, keepdims=True)
    e = jnp.exp(z3 - m)
    denom = jnp.sum(e, axis=-1, keepdims=True)
    if approx_recip:
        inv = pl.reciprocal(denom, approx=True)   # EUP slot, essentially free
    else:
        inv = 1.0 / denom                         # exact normalization
    out_ref[:, 2 * Kp:3 * Kp] = (e * inv).astype(out_ref.dtype)


def fuse_params(params, *, weight_dtype=jnp.bfloat16):
    """Fuses & lane-pads the three linears ONCE (hoisted out of the hot path).

    Returns dict with:
      w : [D, 3*Kp] (weight_dtype),  b : [1, 3*Kp] (float32),  K, Kp
    where Kp = round_up(K, 128).  Padded weight columns are 0; padded bias
    lanes are 0 except the softmax head, which uses -1e30 so its padded lanes
    vanish from the softmax.
    """
    K = params["w1"].shape[1]
    Kp = _round_up(K, _LANE)
    pad = Kp - K

    def pad_w(w):
        return jnp.pad(w, ((0, 0), (0, pad))) if pad else w

    def pad_b(b, fill=0.0):
        return (jnp.pad(b, ((0, 0), (0, pad)), constant_values=fill)
                if pad else b)

    w = jnp.concatenate(
        [pad_w(params["w1"]), pad_w(params["w2"]), pad_w(params["w3"])],
        axis=1).astype(weight_dtype)
    b = jnp.concatenate(
        [pad_b(params["b1"]), pad_b(params["b2"]),
         pad_b(params["b3"], fill=-1e30)],
        axis=1).astype(jnp.float32)
    return {"w": w, "b": b, "K": int(K), "Kp": int(Kp)}


def mixture_gaussian_head_forward(x, fused, *, min_var=0.0, block_b=1024,
                                  approx_softmax_recip=True):
    """MixtureGaussianHead forward.

    Args:
      x: [B, D] float32 input.
      fused: dict from fuse_params() (fused, lane-padded weights).
      min_var: scalar added inside the sqrt (compile-time constant).
      block_b: batch tile size for very large B (multiple of 8).
      approx_softmax_recip: approximate EUP reciprocal for the softmax
        denominator (~1e-3 relative error on ws); set False for exact.

    Returns:
      (mus, sigs, ws): each [B, K] float32 — the MixtureGaussianDist params.
    """
    B, D = x.shape
    K, Kp = fused["K"], fused["Kp"]
    K3p = 3 * Kp
    w, b = fused["w"], fused["b"]

    x = x.astype(w.dtype)   # bf16 MXU path when the fused weight is bf16

    # Batch tiling:
    #   * tiny batch (<=8 rows): one full-batch tile;
    #   * small/medium batch: split into two tiles so both v7x TensorCores
    #     receive a "parallel" grid step;
    #   * large batch: block_b-row tiles (amortizes ~0.35us per-step overhead).
    if B <= 8:
        TB = B
    elif B <= 2 * block_b:
        TB = _round_up(pl.cdiv(B, 2), 8)
    else:
        TB = block_b
    B_pad = _round_up(B, TB)
    if B_pad != B:
        x = jnp.pad(x, ((0, B_pad - B), (0, 0)))
    grid = (B_pad // TB,)

    kernel = functools.partial(_mgh_kernel, Kp=Kp, min_var=float(min_var),
                               approx_recip=approx_softmax_recip)

    # Explicit VMEM budget: double-buffered x/out tiles + resident fused W/b
    # (counted twice for worst-case compiler buffering), with 2x headroom.
    need = (2 * TB * D * x.dtype.itemsize
            + 2 * TB * K3p * 4
            + 2 * D * K3p * w.dtype.itemsize
            + 2 * K3p * 4)
    vmem_limit = int(min(64 * 2**20, max(32 * 2**20, 2 * need)))

    cost = pl.CostEstimate(
        flops=2 * B_pad * D * K3p,
        transcendentals=4 * B_pad * Kp,
        bytes_accessed=(B_pad * D * x.dtype.itemsize
                        + D * K3p * w.dtype.itemsize
                        + K3p * 4
                        + B_pad * K3p * 4),
    )

    # TODO(synk): for very large D*K (e.g. D=4096, K>=1024 on v7x's 64 MiB
    # VMEM) give the resident fused-weight spec pipeline_mode=pl.Buffered(1)
    # or add a grid axis tiling the 3*Kp lanes; unnecessary at these sizes.
    out = pl.pallas_call(
        kernel,
        out_shape=jax.ShapeDtypeStruct((B_pad, K3p), jnp.float32),
        grid_spec=pltpu.PrefetchScalarGridSpec(
            num_scalar_prefetch=0,
            grid=grid,
            in_specs=[
                pl.BlockSpec((TB, D), lambda i: (i, 0)),    # x tile (pipelined)
                pl.BlockSpec((D, K3p), lambda i: (0, 0)),   # fused W, VMEM-resident
                pl.BlockSpec((1, K3p), lambda i: (0, 0)),   # fused bias, resident
            ],
            out_specs=pl.BlockSpec((TB, K3p), lambda i: (i, 0)),
        ),
        compiler_params=pltpu.CompilerParams(
            dimension_semantics=("parallel",),
            vmem_limit_bytes=vmem_limit),
        cost_estimate=cost,
    )(x, w, b)

    mus = out[:B, :K]
    sigs = out[:B, Kp:Kp + K]
    ws = out[:B, 2 * Kp:2 * Kp + K]
    return mus, sigs, ws


def init_params(key, input_size, out_size, n_mix):
    """Deterministic init mimicking torch.nn.Linear (uniform +/- 1/sqrt(fan_in))."""
    K = out_size * n_mix
    bound = 1.0 / math.sqrt(input_size)
    keys = jax.random.split(key, 6)
    mk_w = lambda k: jax.random.uniform(k, (input_size, K), jnp.float32,
                                        minval=-bound, maxval=bound)
    mk_b = lambda k: jax.random.uniform(k, (1, K), jnp.float32,
                                        minval=-bound, maxval=bound)
    return {
        "w1": mk_w(keys[0]), "b1": mk_b(keys[1]),
        "w2": mk_w(keys[2]), "b2": mk_b(keys[3]),
        "w3": mk_w(keys[4]), "b3": mk_b(keys[5]),
    }


def _reference(x, params, min_var=0.0):
    """Pure-JAX reference for the correctness check."""
    mus = x @ params["w1"] + params["b1"]
    z2 = x @ params["w2"] + params["b2"]
    sigs = jnp.sqrt(jax.nn.softplus(z2) + min_var)
    z3 = x @ params["w3"] + params["b3"]
    ws = jax.nn.softmax(z3, axis=-1)
    return mus, sigs, ws


if __name__ == "__main__":
    # Small shapes consistent with the module: x is [batch, input_size].
    batch, input_size, out_size, n_mix = 8, 32, 4, 5
    min_var = 0.0

    key = jax.random.PRNGKey(0)
    k_x, k_p = jax.random.split(key)
    x = jax.random.normal(k_x, (batch, input_size), jnp.float32)
    params = init_params(k_p, input_size, out_size, n_mix)
    r_mus, r_sigs, r_ws = _reference(x, params, min_var)

    # 1) Exact path (f32 weights, exact softmax reciprocal): tight tolerances.
    fused32 = fuse_params(params, weight_dtype=jnp.float32)
    mus, sigs, ws = mixture_gaussian_head_forward(
        x, fused32, min_var=min_var, approx_softmax_recip=False)
    jax.block_until_ready((mus, sigs, ws))
    assert jnp.allclose(mus, r_mus, atol=1e-5, rtol=1e-5)
    assert jnp.allclose(sigs, r_sigs, atol=1e-5, rtol=1e-5)
    assert jnp.allclose(ws, r_ws, atol=1e-5, rtol=1e-5)
    # Mixture weights sum to 1 over out_size*n_mix, exactly as the flat
    # torch F.log_softmax(dim=-1).
    assert jnp.allclose(jnp.sum(ws, axis=-1), 1.0, atol=1e-5)

    # 2) Default fast path (bf16 weights/x, approx softmax reciprocal):
    #    validated against the f32 reference with loosened tolerances.
    fused = fuse_params(params)  # bf16 weights, fused once
    d_mus, d_sigs, d_ws = mixture_gaussian_head_forward(
        x, fused, min_var=min_var)
    jax.block_until_ready((d_mus, d_sigs, d_ws))
    assert jnp.allclose(d_mus, r_mus, atol=5e-2, rtol=5e-2)
    assert jnp.allclose(d_sigs, r_sigs, atol=5e-2, rtol=5e-2)
    assert jnp.allclose(d_ws, r_ws, atol=5e-2, rtol=5e-2)
    assert jnp.allclose(jnp.sum(d_ws, axis=-1), 1.0, atol=1e-2)

    # 3) Larger batch: exercises the 2-tile "parallel" grid (both v7x TCs)
    #    plus the batch-padding path (1037 -> 2 x 520-row tiles).
    big_B = 1037
    xb = jax.random.normal(k_x, (big_B, input_size), jnp.float32)
    b_mus, b_sigs, b_ws = mixture_gaussian_head_forward(
        xb, fused32, min_var=min_var, approx_softmax_recip=False)
    jax.block_until_ready((b_mus, b_sigs, b_ws))
    rb_mus, rb_sigs, rb_ws = _reference(xb, params, min_var)
    assert jnp.allclose(b_mus, rb_mus, atol=1e-5, rtol=1e-5)
    assert jnp.allclose(b_sigs, rb_sigs, atol=1e-5, rtol=1e-5)
    assert jnp.allclose(b_ws, rb_ws, atol=1e-5, rtol=1e-5)

    # TODO(synk): MixtureGaussianDist sampling/entropy (Categorical sample,
    # HNA estimator) is stochastic host-side logic, not part of forward();
    # not kernelized.
    print("KERNEL_OK")
</pallas_src>

<mosaic_0001>
module attributes {stable_mosaic.version = 11 : i64} {
  func.func @_mgh_kernel(%arg0: i32, %arg1: memref<8x32xf32, #tpu.memory_space<vmem>>, %arg2: memref<32x384xf32, #tpu.memory_space<vmem>>, %arg3: memref<1x384xf32, #tpu.memory_space<vmem>>, %arg4: memref<8x384xf32, #tpu.memory_space<vmem>>) attributes {dimension_semantics = [#tpu.dimension_semantics<parallel>], iteration_bounds = array<i64: 1>, scalar_prefetch = 0 : i64, scratch_operands = 0 : i64, tpu.core_type = #tpu.core_type<tc>, window_params = [{transform_indices = @transform_0, window_bounds = array<i64: 8, 32>}, {pipeline_mode = #tpu.pipeline_mode<synchronous>, transform_indices = @transform_1, window_bounds = array<i64: 32, 384>}, {pipeline_mode = #tpu.pipeline_mode<synchronous>, transform_indices = @transform_2, window_bounds = array<i64: 1, 384>}, {transform_indices = @transform_3, window_bounds = array<i64: 8, 384>}]} {
    %c0 = arith.constant 0 : index
    %c0_0 = arith.constant 0 : index
    %0 = vector.load %arg1[%c0, %c0_0] : memref<8x32xf32, #tpu.memory_space<vmem>>, vector<8x32xf32>
    %c0_1 = arith.constant 0 : index
    %c0_2 = arith.constant 0 : index
    %1 = vector.load %arg2[%c0_1, %c0_2] : memref<32x384xf32, #tpu.memory_space<vmem>>, vector<32x384xf32>
    %cst = arith.constant dense<0.000000e+00> : vector<8x384xf32>
    %2 = tpu.matmul %0, %1, %cst {dimension_numbers = #tpu.dot_dimension_numbers<[1], [0], [0], [1], [0, 0, 1, 1], [], []>} : vector<8x32xf32>, vector<32x384xf32>, vector<8x384xf32> -> vector<8x384xf32>
    %c0_3 = arith.constant 0 : index
    %c0_4 = arith.constant 0 : index
    %3 = vector.load %arg3[%c0_3, %c0_4] : memref<1x384xf32, #tpu.memory_space<vmem>>, vector<1x384xf32>
    %4 = vector.broadcast %3 : vector<1x384xf32> to vector<8x384xf32>
    %5 = arith.addf %2, %4 : vector<8x384xf32>
    %6 = vector.extract_strided_slice %5 {offsets = [0, 0], sizes = [8, 128], strides = [1, 1]} : vector<8x384xf32> to vector<8x128xf32>
    %c0_5 = arith.constant 0 : index
    %c0_6 = arith.constant 0 : index
    %7 = vector.load %arg4[%c0_5, %c0_6] : memref<8x384xf32, #tpu.memory_space<vmem>>, vector<8x128xf32>
    tpu.vector_store %arg4[%c0_5, %c0_6], %6 {strides = array<i32>} : memref<8x384xf32, #tpu.memory_space<vmem>>, vector<8x128xf32>,
    %8 = vector.extract_strided_slice %5 {offsets = [0, 128], sizes = [8, 128], strides = [1, 1]} : vector<8x384xf32> to vector<8x128xf32>
    %cst_7 = arith.constant 2.000000e+01 : f32
    %9 = vector.broadcast %cst_7 : f32 to vector<8x128xf32>
    %10 = arith.cmpf ogt, %8, %9 : vector<8x128xf32>
    %cst_8 = arith.constant 2.000000e+01 : f32
    %11 = vector.broadcast %cst_8 : f32 to vector<8x128xf32>
    %12 = arith.minimumf %8, %11 : vector<8x128xf32>
    %13 = math.exp %12 : vector<8x128xf32>
    %14 = math.log1p %13 : vector<8x128xf32>
    %15 = arith.select %10, %8, %14 : vector<8x128xi1>, vector<8x128xf32>
    %cst_9 = arith.constant 0.000000e+00 : f32
    %16 = vector.broadcast %cst_9 : f32 to vector<8x128xf32>
    %17 = arith.addf %15, %16 : vector<8x128xf32>
    %18 = math.sqrt %17 : vector<8x128xf32>
    %c0_10 = arith.constant 0 : index
    %c128 = arith.constant 128 : index
    %19 = vector.load %arg4[%c0_10, %c128] : memref<8x384xf32, #tpu.memory_space<vmem>>, vector<8x128xf32>
    tpu.vector_store %arg4[%c0_10, %c128], %18 {strides = array<i32>} : memref<8x384xf32, #tpu.memory_space<vmem>>, vector<8x128xf32>,
    %20 = vector.extract_strided_slice %5 {offsets = [0, 256], sizes = [8, 128], strides = [1, 1]} : vector<8x384xf32> to vector<8x128xf32>
    %cst_11 = arith.constant dense<0xFF800000> : vector<8xf32>
    %21 = vector.multi_reduction <maximumf>, %20, %cst_11 [1] : vector<8x128xf32> to vector<8xf32>
    %22 = vector.shape_cast %21 : vector<8xf32> to vector<8x1xf32>
    %23 = vector.broadcast %22 : vector<8x1xf32> to vector<8x128xf32>
    %24 = arith.subf %20, %23 : vector<8x128xf32>
    %25 = math.exp %24 : vector<8x128xf32>
    %cst_12 = arith.constant dense<0.000000e+00> : vector<8xf32>
    %26 = vector.multi_reduction <add>, %25, %cst_12 [1] : vector<8x128xf32> to vector<8xf32>
    %27 = vector.shape_cast %26 : vector<8xf32> to vector<8x1xf32>
    %cst_13 = arith.constant 1.000000e+00 : f32
    %28 = vector.broadcast %cst_13 : f32 to vector<8x1xf32>
    %29 = arith.divf %28, %27 : vector<8x1xf32>
    %30 = vector.broadcast %29 : vector<8x1xf32> to vector<8x128xf32>
    %31 = arith.mulf %25, %30 : vector<8x128xf32>
    %c0_14 = arith.constant 0 : index
    %c256 = arith.constant 256 : index
    %32 = vector.load %arg4[%c0_14, %c256] : memref<8x384xf32, #tpu.memory_space<vmem>>, vector<8x128xf32>
    tpu.vector_store %arg4[%c0_14, %c256], %31 {strides = array<i32>} : memref<8x384xf32, #tpu.memory_space<vmem>>, vector<8x128xf32>,
    return
  }
  func.func @transform_0(%arg0: i32) -> (i32, i32) {
    %c0_i32 = arith.constant 0 : i32
    %c0_i32_0 = arith.constant 0 : i32
    return %arg0, %c0_i32 : i32, i32
  }
  func.func @transform_1(%arg0: i32) -> (i32, i32) {
    %c0_i32 = arith.constant 0 : i32
    %c0_i32_0 = arith.constant 0 : i32
    %c0_i32_1 = arith.constant 0 : i32
    return %c0_i32, %c0_i32_0 : i32, i32
  }
  func.func @transform_2(%arg0: i32) -> (i32, i32) {
    %c0_i32 = arith.constant 0 : i32
    %c0_i32_0 = arith.constant 0 : i32
    %c0_i32_1 = arith.constant 0 : i32
    return %c0_i32, %c0_i32_0 : i32, i32
  }
  func.func @transform_3(%arg0: i32) -> (i32, i32) {
    %c0_i32 = arith.constant 0 : i32
    %c0_i32_0 = arith.constant 0 : i32
    return %arg0, %c0_i32 : i32, i32
  }
}

</mosaic_0001>

<llo_original>
// kernel: tpu_custom_call.1
$region0: #{tpu_custom_call.1}
  #allocation0 [shape = 'u32[]', space=smem, size = 0x4, offset = 0x4, fixed_abs, tag = 'smem constant byte address 0x4 - core index']
  #allocation1 [shape = 'u32[144,128]{1,0:T(1,128)}', space=vmem, size = 0x12000, scoped, tag = 'internal scratch']
  %s0 = inlined_call_operand.hbm [shape: f32[8,32], index: 0, kind: input, shape index: {}]
  %s1 = inlined_call_operand.hbm [shape: f32[32,384], index: 1, kind: input, shape index: {}]
  %s2 = inlined_call_operand.vmem [shape: f32[1,384], index: 2, kind: input, shape index: {}]
  %s3 = inlined_call_operand.hbm [shape: f32[8,384], index: 3, kind: output, shape index: {}]
  %s4 = sld [smem:[#allocation0]]
  $region30: #{tpu_custom_call.1} parent=0
    _
  %s6 = ssub.s32 1, %s4
  %s7 = scalar_select 0, %s6, %s4
  $region1: #{tpu_custom_call.1} parent=0
    #allocation2 [shape = 'u8[4096]{0}', space=vmem, size = 0x1000, scoped, tag = 'input window, operand 0, single buffered']
    #allocation3 [shape = 's32[1]{0}', space=sflag, size = 0x4, scoped, tag = 'scoped memory for tpu_custom_call.1']
    #allocation4 [shape = 's32[1]{0}', space=sflag, size = 0x4, scoped, tag = 'scoped memory for tpu_custom_call.1']
    #allocation5 [shape = 'u8[49152]{0}', space=vmem, size = 0xc000, scoped, tag = 'input window, operand 1, single buffered']
    #allocation6 [shape = 's32[1]{0}', space=sflag, size = 0x4, scoped, tag = 'scoped memory for tpu_custom_call.1']
    #allocation7 [shape = 'u8[12288]{0}', space=vmem, size = 0x3000, scoped, tag = 'output window, operand 0, single buffered']
    %8 = vsyncpa [#allocation3], 0
    %9 = vsyncpa [#allocation6], 0
    %10 = vsyncpa [#allocation4], 0
    // Predicated region
    $region2: #{tpu_custom_call.1} parent=1 // pred_check
      _
    $region3: #{tpu_custom_call.1} parent=1 // pred_check_branch
      %12 = sbr.rel (0) target = $region5
    $region4: #{tpu_custom_call.1} parent=1 // pred_region
      %s14 = ssub.s32 128, 128
      %15 = vsyncadd [#allocation3], %s14
      %s17 = sshll.u32 [#allocation2], 4
      %s18 = int_to_ptr.vmem [resolvable:$true] %s17
      %20 = dma.hbm_to_vmem [thread:$0]  %s0, 128, %s18, [#allocation3]
    $region5: #{tpu_custom_call.1} parent=1 // pred_fallthru
      _
    // Predicated region
    $region6: #{tpu_custom_call.1} parent=1 // pred_check
      _
    $region7: #{tpu_custom_call.1} parent=1 // pred_check_branch
      %22 = sbr.rel (0) target = $region9
    $region8: #{tpu_custom_call.1} parent=1 // pred_region
      %s24 = ssub.s32 1536, 1536
      %25 = vsyncadd [#allocation6], %s24
      %s26 = sshll.u32 [#allocation5], 4
      %s27 = int_to_ptr.vmem [resolvable:$true] %s26
      %32 = dma.hbm_to_vmem [thread:$0]  %s1, 1536, %s27, [#allocation6], 384, 384, 24
    $region9: #{tpu_custom_call.1} parent=1 // pred_fallthru
      _
    // Predicated region
    $region10: #{tpu_custom_call.1} parent=1 // pred_check
      _
    $region11: #{tpu_custom_call.1} parent=1 // pred_check_branch
      %34 = sbr.rel (0) target = $region13
    $region12: #{tpu_custom_call.1} parent=1 // pred_region
      _
    $region13: #{tpu_custom_call.1} parent=1 // pred_fallthru
      _
    // Predicated region
    $region14: #{tpu_custom_call.1} parent=1 // pred_check
      _
    $region15: #{tpu_custom_call.1} parent=1 // pred_check_branch
      %36 = sbr.rel (0) target = $region17
    $region16: #{tpu_custom_call.1} parent=1 // pred_region
      %37 = dma.done [#allocation3], 128
    $region17: #{tpu_custom_call.1} parent=1 // pred_fallthru
      _
    // Predicated region
    $region18: #{tpu_custom_call.1} parent=1 // pred_check
      _
    $region19: #{tpu_custom_call.1} parent=1 // pred_check_branch
      %39 = sbr.rel (0) target = $region21
    $region20: #{tpu_custom_call.1} parent=1 // pred_region
      %40 = dma.done [#allocation6], 1536
    $region21: #{tpu_custom_call.1} parent=1 // pred_fallthru
      _
    %v41 = vld [vmem:[#allocation2] sm:$0xff]
    %v42 = vld [vmem:[#allocation5] sm:$0xff]
    %v43 = vld [vmem:[#allocation5 + $0x8] sm:$0xff]
    %v44 = vld [vmem:[#allocation5 + $0x10] sm:$0xff]
    %v45 = vld [vmem:[#allocation5 + $0x18] sm:$0xff]
    %v46 = vld [vmem:[#allocation5 + $0x20] sm:$0xff]
    %v47 = vld [vmem:[#allocation5 + $0x28] sm:$0xff]
    %v48 = vld [vmem:[#allocation5 + $0x30] sm:$0xff]
    %v49 = vld [vmem:[#allocation5 + $0x38] sm:$0xff]
    %v50 = vld [vmem:[#allocation5 + $0x40] sm:$0xff]
    %v51 = vld [vmem:[#allocation5 + $0x48] sm:$0xff]
    %v52 = vld [vmem:[#allocation5 + $0x50] sm:$0xff]
    %v53 = vld [vmem:[#allocation5 + $0x58] sm:$0xff]
    %v54 = vld [vmem:[%s2] sm:$0x7]
    %v56 = vlaneseq
    %v57 = vshrl.u32 %v56, 7
    %v58 = vsub.s32 0, %v57
    %v59 = vrot.slane %v54, %v58
    %v60 = vlaneseq
    %v61 = vshrl.u32 %v60, 7
    %v62 = vsub.s32 1, %v61
    %v63 = vrot.slane %v54, %v62
    %v64 = vlaneseq
    %v65 = vshrl.u32 %v64, 7
    %v66 = vsub.s32 2, %v65
    %v67 = vrot.slane %v54, %v66
    %vm71 = vcmask 261120
    %v73 = vsel %vm71, %v41, 0
    %75 = vmatprep.subr.mxu0 %v43
    %76 = vmatpush1.msra.mxu0 %v42
    %77 = vmatprep.subr.mxu0 %v46
    %78 = vmatpush1.msra.mxu0 %v45
    %79 = vmatprep.subr.mxu0 %v49
    %80 = vmatpush1.msra.mxu0 %v48
    %81 = vmatprep.subr.mxu0 %v52
    %82 = vmatpush1.msra.mxu0 %v51
    %83 = vmatprep.subr.mxu0 0.0
    %84 = vmatpush1.msra.mxu0 0.0
    %85 = vmatprep.subr.mxu0 0.0
    %86 = vmatpush1.msra.mxu0 0.0
    %87 = vmatprep.subr.mxu0 0.0
    %88 = vmatpush1.msra.mxu0 0.0
    %89 = vmatprep.subr.mxu0 0.0
    %90 = vmatpush1.msra.mxu0 0.0
    %91 = vmatprep.subr.mxu0 0.0
    %92 = vmatpush1.msra.mxu0 0.0
    %93 = vmatprep.subr.mxu0 0.0
    %94 = vmatpush1.msra.mxu0 0.0
    %95 = vmatprep.subr.mxu0 0.0
    %96 = vmatpush1.msra.mxu0 0.0
    %97 = vmatprep.subr.mxu0 0.0
    %98 = vmatpush1.msra.mxu0 0.0
    %99 = vmatprep.subr.mxu0 0.0
    %100 = vmatpush1.msra.mxu0 0.0
    %101 = vmatprep.subr.mxu0 0.0
    %102 = vmatpush1.msra.mxu0 0.0
    %103 = vmatprep.subr.mxu0 0.0
    %104 = vmatpush1.msra.mxu0 0.0
    %105 = vmatprep.subr.mxu0 0.0
    %106 = vmatpush1.msra.mxu0 0.0
    %107 = vmatprep.subr.mxu0 0.0
    %108 = vmatpush1.msra.mxu0 0.0
    %109 = vmatprep.subr.mxu0 0.0
    %110 = vmatpush1.msra.mxu0 0.0
    %111 = vmatprep.subr.mxu0 0.0
    %112 = vmatpush1.msra.mxu0 0.0
    %113 = vmatprep.subr.mxu0 0.0
    %114 = vmatpush1.msra.mxu0 0.0
    %115 = vmatprep.subr.mxu0 0.0
    %116 = vmatpush1.msra.mxu0 0.0
    %117 = vmatprep.subr.mxu0 0.0
    %118 = vmatpush1.msra.mxu0 0.0
    %119 = vmatprep.subr.mxu0 0.0
    %120 = vmatpush1.msra.mxu0 0.0
    %121 = vmatprep.subr.mxu0 0.0
    %122 = vmatpush1.msra.mxu0 0.0
    %123 = vmatprep.subr.mxu0 0.0
    %124 = vmatpush1.msra.mxu0 0.0
    %125 = vmatprep.subr.mxu0 0.0
    %126 = vmatpush1.msra.mxu0 0.0
    %127 = vmatprep.subr.mxu0 0.0
    %128 = vmatpush1.msra.mxu0 0.0
    %129 = vmatprep.subr.mxu0 0.0
    %130 = vmatpush1.msra.mxu0 0.0
    %131 = vmatprep.subr.mxu0 0.0
    %132 = vmatpush1.msra.mxu0 0.0
    %133 = vmatprep.subr.mxu0 0.0
    %134 = vmatpush1.msra.mxu0 0.0
    %135 = vmatprep.subr.mxu0 0.0
    %136 = vmatpush1.msra.mxu0 0.0
    %137 = vmatprep.subr.mxu0 0.0
    %138 = vmatpush1.msra.mxu0 0.0
    %139 = vmatprep.mubr.f32.mxu0 0.0
    %140 = vmatmul.mubr.f32.gmra.mrb[0].mxu0 %v73
    %v141 = vpop.f32.mrb[0].mxu0
    %v142 = vadd.f32 %v59, %v141
    %v143 = vpop.f32.mrb[0].mxu0
    %v144 = vadd.f32 %v63, %v143
    %145 = vdwg.mxu0
    %146 = vmatprep.subr.mxu0 0.0
    %147 = vmatpush1.msra.mxu0 %v44
    %148 = vmatprep.subr.mxu0 0.0
    %149 = vmatpush1.msra.mxu0 %v47
    %150 = vmatprep.subr.mxu0 0.0
    %151 = vmatpush1.msra.mxu0 %v50
    %152 = vmatprep.subr.mxu0 0.0
    %153 = vmatpush1.msra.mxu0 %v53
    %154 = vmatprep.subr.mxu0 0.0
    %155 = vmatpush1.msra.mxu0 0.0
    %156 = vmatprep.subr.mxu0 0.0
    %157 = vmatpush1.msra.mxu0 0.0
    %158 = vmatprep.subr.mxu0 0.0
    %159 = vmatpush1.msra.mxu0 0.0
    %160 = vmatprep.subr.mxu0 0.0
    %161 = vmatpush1.msra.mxu0 0.0
    %162 = vmatprep.subr.mxu0 0.0
    %163 = vmatpush1.msra.mxu0 0.0
    %164 = vmatprep.subr.mxu0 0.0
    %165 = vmatpush1.msra.mxu0 0.0
    %166 = vmatprep.subr.mxu0 0.0
    %167 = vmatpush1.msra.mxu0 0.0
    %168 = vmatprep.subr.mxu0 0.0
    %169 = vmatpush1.msra.mxu0 0.0
    %170 = vmatprep.subr.mxu0 0.0
    %171 = vmatpush1.msra.mxu0 0.0
    %172 = vmatprep.subr.mxu0 0.0
    %173 = vmatpush1.msra.mxu0 0.0
    %174 = vmatprep.subr.mxu0 0.0
    %175 = vmatpush1.msra.mxu0 0.0
    %176 = vmatprep.subr.mxu0 0.0
    %177 = vmatpush1.msra.mxu0 0.0
    %178 = vmatprep.subr.mxu0 0.0
    %179 = vmatpush1.msra.mxu0 0.0
    %180 = vmatprep.subr.mxu0 0.0
    %181 = vmatpush1.msra.mxu0 0.0
    %182 = vmatprep.subr.mxu0 0.0
    %183 = vmatpush1.msra.mxu0 0.0
    %184 = vmatprep.subr.mxu0 0.0
    %185 = vmatpush1.msra.mxu0 0.0
    %186 = vmatprep.subr.mxu0 0.0
    %187 = vmatpush1.msra.mxu0 0.0
    %188 = vmatprep.subr.mxu0 0.0
    %189 = vmatpush1.msra.mxu0 0.0
    %190 = vmatprep.subr.mxu0 0.0
    %191 = vmatpush1.msra.mxu0 0.0
    %192 = vmatprep.subr.mxu0 0.0
    %193 = vmatpush1.msra.mxu0 0.0
    %194 = vmatprep.subr.mxu0 0.0
    %195 = vmatpush1.msra.mxu0 0.0
    %196 = vmatprep.subr.mxu0 0.0
    %197 = vmatpush1.msra.mxu0 0.0
    %198 = vmatprep.subr.mxu0 0.0
    %199 = vmatpush1.msra.mxu0 0.0
    %200 = vmatprep.subr.mxu0 0.0
    %201 = vmatpush1.msra.mxu0 0.0
    %202 = vmatprep.subr.mxu0 0.0
    %203 = vmatpush1.msra.mxu0 0.0
    %204 = vmatprep.subr.mxu0 0.0
    %205 = vmatpush1.msra.mxu0 0.0
    %206 = vmatprep.subr.mxu0 0.0
    %207 = vmatpush1.msra.mxu0 0.0
    %208 = vmatprep.subr.mxu0 0.0
    %209 = vmatpush1.msra.mxu0 0.0
    %210 = vmatprep.mubr.f32.mxu0 0.0
    %211 = vmatmul.mubr.f32.gmra.mrb[0].mxu0 %v73
    %v212 = vpop.f32.mrb[0].mxu0
    %v213 = vadd.f32 %v67, %v212
    %v214 = vpop.f32.mrb[0].mxu0
    %215 = vdwg.mxu0
    %216 = vst [vmem:[#allocation7] sm:$0xff] %v142
    %vm217 = vcmp.gt.f32.partialorder %v144, 20.0
    %v218 = vmin.f32 %v144, 20.0
    %v219 = vmul.f32 %v218, 1.442695
    %v220 = vpow.pop %v219
    %v221 = vadd.f32 %v220, 1.0
    %v222 = vlog2.pop %v221
    %v223 = vmul.f32 %v222, 0.6931472
    %v224 = vmul.f32 -0.5, %v220
    %v225 = vadd.f32 %v224, 1.0
    %v226 = vmul.f32 %v225, %v220
    %v227 = vand.u32 2147483647, %v220
    %vm228 = vcmp.lt.f32.partialorder %v227, 0.0004427343
    %v229 = vsel %vm228, %v226, %v223
    %v230 = vsel %vm217, %v144, %v229
    %v231 = vadd.f32 %v230, 0.0
    %v232 = vrsqrt.pop %v231
    %v233 = vmul.f32 %v231, %v232
    %vm234 = vcmp.eq.f32.partialorder %v231, inf
    %v235 = vsel %vm234, %v231, %v233
    %vm236 = vcmp.eq.f32.partialorder %v231, 0.0
    %v237 = vand.u32 %v231, 2147483648
    %v238 = vsel %vm236, %v237, %v235
    %239 = vst [vmem:[#allocation7 + $0x8] sm:$0xff] %v238
    %240 = vmax.xlane.f32.xlu0 %v213
    %v241 = vpop.xlane.xlu0 %240
    %v242 = vsub.f32 %v213, %v241
    %v243 = vmul.f32 %v242, 1.442695
    %v244 = vpow.pop %v243
    %245 = vadd.xlane.f32.xlu0 %v244
    %v246 = vpop.xlane.xlu0 %245
    %v247 = vrcp.pop %v246
    %v248 = vmul.f32 1.0, %v247
    %v249 = vmul.f32 %v244, %v248
    %250 = vst [vmem:[#allocation7 + $0x10] sm:$0xff] %v249
    // Predicated region
    $region22: #{tpu_custom_call.1} parent=1 // pred_check
      _
    $region23: #{tpu_custom_call.1} parent=1 // pred_check_branch
      %252 = sbr.rel (0) target = $region25
    $region24: #{tpu_custom_call.1} parent=1 // pred_region
      %s254 = ssub.s32 384, 384
      %255 = vsyncadd [#allocation4], %s254
      %s257 = sshll.u32 [#allocation7], 4
      %s258 = int_to_ptr.vmem [resolvable:$true] %s257
      %260 = dma.vmem_to_hbm [thread:$0]  %s258, 384, %s3, [#allocation4]
    $region25: #{tpu_custom_call.1} parent=1 // pred_fallthru
      _
    // Predicated region
    $region26: #{tpu_custom_call.1} parent=1 // pred_check
      _
    $region27: #{tpu_custom_call.1} parent=1 // pred_check_branch
      %262 = sbr.rel (0) target = $region29
    $region28: #{tpu_custom_call.1} parent=1 // pred_region
      %263 = dma.done [#allocation4], 384
    $region29: #{tpu_custom_call.1} parent=1 // pred_fallthru
      _
    %264 = vsyncpa [#allocation3], 1
    %265 = vsyncpa [#allocation6], 1
    %266 = vsyncpa [#allocation4], 1

</llo_original>
